<compile_context>
chip_gen: v7x
topology: tpu7x:2x2x1
jax: 0.10.0
libtpu: 0.0.40
codegen_flags: <defaults>
</compile_context>

<pallas_src>
import functools

import jax
import jax.numpy as jnp
from jax.experimental import pallas as pl
from jax.experimental.pallas import tpu as pltpu


def _cdiv(a, b):
    return -(-a // b)


def _round_up(a, b):
    return _cdiv(a, b) * b


def _int_pow(x, n):
    """x ** n for small static non-negative int n via repeated multiply (VPU only)."""
    result = None
    base = x
    while n > 0:
        if n & 1:
            result = base if result is None else result * base
        n >>= 1
        if n:
            base = base * base
    return result if result is not None else jnp.ones_like(x)


def _dice_loss_kernel(x_ref, t_ref, num_ref, den_ref, *, gamma, scale,
                      ignore_index, eps, smooth):
    # Zero the per-core running accumulators on the first tile of this core's
    # row stream (output block index depends only on the parallel core axis,
    # so the block stays resident in VMEM across the "arbitrary" tile axis).
    @pl.when(pl.program_id(1) == 0)
    def _():
        num_ref[...] = jnp.zeros_like(num_ref)
        den_ref[...] = jnp.zeros_like(den_ref)

    x = x_ref[...].astype(jnp.float32)   # upcast in-kernel (bf16/f16 stream as-is from HBM)
    t = t_ref[...]                       # (TN, 1) int32
    tn, c = x.shape

    # Softmax over the class (lane) axis; approx reciprocal -> EUP slot (cheap).
    m = jnp.max(x, axis=-1, keepdims=True)
    e = jnp.exp(x - m)
    p = e * pl.reciprocal(jnp.sum(e, axis=-1, keepdims=True), approx=True)

    # input_soft = scale * (1 - p)**gamma * p   (gamma static; integer gamma
    # avoids a transcendental pow -> pure VPU multiplies).
    if gamma != 0.0:
        if float(gamma).is_integer() and 0 < gamma <= 16:
            focal = _int_pow(1.0 - p, int(gamma))
        else:
            focal = (1.0 - p) ** gamma
        p = scale * focal * p
    elif scale != 1.0:
        p = scale * p

    # One-hot(target) from a class-index iota; ignored / padded rows (-100) -> all zeros.
    cls = jax.lax.broadcasted_iota(jnp.int32, (tn, c), 1)
    one_hot = (cls == t).astype(jnp.float32)              # (TN, C)
    valid = (t != ignore_index).astype(jnp.float32)       # (TN, 1)

    intersection = jnp.sum(p * one_hot, axis=-1, keepdims=True)   # (TN, 1)
    cardinality = jnp.sum(p + one_hot, axis=-1, keepdims=True)    # (TN, 1)
    dice = (2.0 * intersection + smooth) / (cardinality + eps + smooth)
    loss = (1.0 - dice) * valid                                   # padded/ignored rows -> 0

    num_ref[...] = num_ref[...] + jnp.sum(loss)
    den_ref[...] = den_ref[...] + jnp.sum(valid)


def dice_loss(logits, target, *, gamma=0, scale=1.0, reduction="mean",
              ignore_index=-100, eps=1e-6, smooth=0.0, block_rows=None):
    """Pallas-TPU DiceLoss forward. logits: (N, C); target: (N,) int."""
    if logits.ndim != 2:
        raise ValueError(f"Invalid input shape, we expect NxC. Got: {logits.shape}")
    if logits.shape[0] != target.shape[0]:
        raise ValueError("number of elements in input and target must match")
    if reduction not in ("mean", "sum"):
        # TODO(synk): reduction='none'/None returns a dynamically-shaped
        # (ignore-filtered) per-row tensor in PyTorch; not expressible with
        # static shapes here.
        raise NotImplementedError(f"Invalid reduction mode: {reduction}")

    n, c = logits.shape
    t = target.astype(jnp.int32).reshape(n, 1)

    # ---- tile-size derivation (lane-padding aware; fits every TPU generation) ----
    # VMEM footprint per tile row: f32 logits padded to multiples of 128 lanes
    # + the (TN, 1) int32 target block, which also occupies 128 lanes.
    lane_c = _round_up(c, 128)
    bytes_per_row = (lane_c + 128) * 4
    vmem_budget_per_buffer = 8 * 1024 * 1024      # x2 for double-buffering -> ~16 MiB peak
    if block_rows is None:
        block_rows = (vmem_budget_per_buffer // bytes_per_row) // 8 * 8
        block_rows = max(8, min(4096, block_rows))
    tn = max(8, min(block_rows, _round_up(n, 8)) // 8 * 8)
    # TODO(synk): for very large C where a (TN, C) tile cannot fit VMEM, add a
    # second grid axis over C with an online softmax instead of shrinking TN.

    n_cores = 2  # megacore split on v7x; harmless serial outer loop on v5e/v6e
    tiles_per_core = max(1, _cdiv(_cdiv(n, tn), n_cores))
    padded_n = n_cores * tiles_per_core * tn

    x = logits
    if padded_n != n:
        x = jnp.pad(x, ((0, padded_n - n), (0, 0)))                       # rows masked out below
        t = jnp.pad(t, ((0, padded_n - n), (0, 0)), constant_values=ignore_index)

    kernel = functools.partial(
        _dice_loss_kernel,
        gamma=float(gamma), scale=float(scale), ignore_index=int(ignore_index),
        eps=float(eps), smooth=float(smooth),
    )

    num, den = pl.pallas_call(
        kernel,
        out_shape=(jax.ShapeDtypeStruct((n_cores, 1, 1), jnp.float32),
                   jax.ShapeDtypeStruct((n_cores, 1, 1), jnp.float32)),
        grid_spec=pltpu.PrefetchScalarGridSpec(
            num_scalar_prefetch=0,
            grid=(n_cores, tiles_per_core),
            in_specs=[
                pl.BlockSpec((tn, c), lambda cc, i: (cc * tiles_per_core + i, 0)),
                pl.BlockSpec((tn, 1), lambda cc, i: (cc * tiles_per_core + i, 0)),
            ],
            out_specs=[
                pl.BlockSpec((1, 1, 1), lambda cc, i: (cc, 0, 0)),
                pl.BlockSpec((1, 1, 1), lambda cc, i: (cc, 0, 0)),
            ],
        ),
        compiler_params=pltpu.CompilerParams(
            dimension_semantics=("parallel", "arbitrary"),
            vmem_limit_bytes=32 * 1024 * 1024),
    )(x, t)

    num_s = jnp.sum(num)
    den_s = jnp.sum(den)
    if reduction == "mean":
        # NaN when every row is ignore_index — matches the PyTorch module.
        return num_s / den_s
    return num_s  # reduction == "sum"


def _dice_loss_ref(logits, target, *, gamma=0, scale=1.0, reduction="mean",
                   ignore_index=-100, eps=1e-6, smooth=0.0):
    """Pure-JAX reference mirroring the PyTorch module."""
    p = jax.nn.softmax(logits.astype(jnp.float32), axis=1)
    p = scale * (1.0 - p) ** gamma * p
    valid = target != ignore_index
    one_hot = jax.nn.one_hot(jnp.where(valid, target, 0), logits.shape[1], dtype=p.dtype)
    one_hot = jnp.where(valid[:, None], one_hot, 0.0)
    inter = jnp.sum(p * one_hot, axis=-1)
    card = jnp.sum(p + one_hot, axis=-1)
    dice = (2.0 * inter + smooth) / (card + eps + smooth)
    loss = (1.0 - dice) * valid.astype(p.dtype)
    if reduction == "mean":
        return jnp.sum(loss) / jnp.sum(valid.astype(p.dtype))
    return jnp.sum(loss)


if __name__ == "__main__":
    key = jax.random.PRNGKey(0)
    k1, k2, k3, k4 = jax.random.split(key, 4)

    # Test 1: default params, f32 logits, one ignored row.
    N1, C1 = 8, 16
    logits1 = jax.random.normal(k1, (N1, C1), dtype=jnp.float32)
    target1 = jax.random.randint(k2, (N1,), 0, C1, dtype=jnp.int32)
    target1 = target1.at[3].set(-100)

    out1 = dice_loss(logits1, target1)
    jax.block_until_ready(out1)
    ref1 = _dice_loss_ref(logits1, target1)
    assert jnp.allclose(out1, ref1, atol=3e-3, rtol=3e-3), (out1, ref1)

    # Test 2: bf16 logits (in-kernel upcast), focal gamma/scale, ragged N with
    # explicit small tile to exercise multi-tile accumulation + padding, both reductions.
    N2, C2 = 50, 7
    logits2 = jax.random.normal(k3, (N2, C2), dtype=jnp.bfloat16)
    target2 = jax.random.randint(k4, (N2,), 0, C2, dtype=jnp.int32)
    target2 = target2.at[0].set(-100)
    target2 = target2.at[17].set(-100)

    out2m = dice_loss(logits2, target2, gamma=2, scale=0.5, block_rows=16)
    out2s = dice_loss(logits2, target2, gamma=2, scale=0.5, reduction="sum", block_rows=16)
    jax.block_until_ready((out2m, out2s))
    ref2m = _dice_loss_ref(logits2, target2, gamma=2, scale=0.5)
    ref2s = _dice_loss_ref(logits2, target2, gamma=2, scale=0.5, reduction="sum")
    assert jnp.allclose(out2m, ref2m, atol=3e-3, rtol=3e-3), (out2m, ref2m)
    assert jnp.allclose(out2s, ref2s, atol=3e-2, rtol=3e-3), (out2s, ref2s)

    print("KERNEL_OK")
</pallas_src>

<mosaic_0001>
module attributes {stable_mosaic.version = 11 : i64} {
  func.func @_dice_loss_kernel(%arg0: i32, %arg1: i32, %arg2: memref<8x16xf32, #tpu.memory_space<vmem>>, %arg3: memref<8x1xi32, #tpu.memory_space<vmem>>, %arg4: memref<1x1x1xf32, #tpu.memory_space<vmem>>, %arg5: memref<1x1x1xf32, #tpu.memory_space<vmem>>) attributes {dimension_semantics = [#tpu.dimension_semantics<parallel>, #tpu.dimension_semantics<arbitrary>], iteration_bounds = array<i64: 2, 1>, scalar_prefetch = 0 : i64, scratch_operands = 0 : i64, tpu.core_type = #tpu.core_type<tc>, window_params = [{transform_indices = @transform_0, window_bounds = array<i64: 8, 16>}, {transform_indices = @transform_1, window_bounds = array<i64: 8, 1>}, {transform_indices = @transform_2, window_bounds = array<i64: 1, 1, 1>}, {transform_indices = @transform_3, window_bounds = array<i64: 1, 1, 1>}]} {
    %c0_i32 = arith.constant 0 : i32
    %0 = arith.cmpi eq, %arg1, %c0_i32 : i32
    %1 = arith.extui %0 : i1 to i32
    %c0_i32_0 = arith.constant 0 : i32
    %2 = arith.cmpi ne, %1, %c0_i32_0 : i32
    scf.if %2 {
      %cst_26 = arith.constant 0.000000e+00 : f32
      %58 = vector.broadcast %cst_26 : f32 to vector<1x1x1xf32>
      %c0_27 = arith.constant 0 : index
      %c0_28 = arith.constant 0 : index
      %c0_29 = arith.constant 0 : index
      %59 = vector.load %arg4[%c0_27, %c0_28, %c0_29] : memref<1x1x1xf32, #tpu.memory_space<vmem>>, vector<1x1x1xf32>
      tpu.vector_store %arg4[%c0_27, %c0_28, %c0_29], %58 {strides = array<i32>} : memref<1x1x1xf32, #tpu.memory_space<vmem>>, vector<1x1x1xf32>,
      %cst_30 = arith.constant 0.000000e+00 : f32
      %60 = vector.broadcast %cst_30 : f32 to vector<1x1x1xf32>
      %c0_31 = arith.constant 0 : index
      %c0_32 = arith.constant 0 : index
      %c0_33 = arith.constant 0 : index
      %61 = vector.load %arg5[%c0_31, %c0_32, %c0_33] : memref<1x1x1xf32, #tpu.memory_space<vmem>>, vector<1x1x1xf32>
      tpu.vector_store %arg5[%c0_31, %c0_32, %c0_33], %60 {strides = array<i32>} : memref<1x1x1xf32, #tpu.memory_space<vmem>>, vector<1x1x1xf32>,
    } else {
    }
    %c0 = arith.constant 0 : index
    %c0_1 = arith.constant 0 : index
    %3 = vector.load %arg2[%c0, %c0_1] : memref<8x16xf32, #tpu.memory_space<vmem>>, vector<8x16xf32>
    %c0_2 = arith.constant 0 : index
    %c0_3 = arith.constant 0 : index
    %4 = vector.load %arg3[%c0_2, %c0_3] : memref<8x1xi32, #tpu.memory_space<vmem>>, vector<8x1xi32>
    %cst = arith.constant dense<0xFF800000> : vector<8xf32>
    %5 = vector.multi_reduction <maximumf>, %3, %cst [1] : vector<8x16xf32> to vector<8xf32>
    %6 = vector.shape_cast %5 : vector<8xf32> to vector<8x1xf32>
    %7 = vector.broadcast %6 : vector<8x1xf32> to vector<8x16xf32>
    %8 = arith.subf %3, %7 : vector<8x16xf32>
    %9 = math.exp %8 : vector<8x16xf32>
    %cst_4 = arith.constant dense<0.000000e+00> : vector<8xf32>
    %10 = vector.multi_reduction <add>, %9, %cst_4 [1] : vector<8x16xf32> to vector<8xf32>
    %11 = vector.shape_cast %10 : vector<8xf32> to vector<8x1xf32>
    %12 = tpu.reciprocal %11 {approx = true} : vector<8x1xf32> -> vector<8x1xf32>
    %13 = vector.broadcast %12 : vector<8x1xf32> to vector<8x16xf32>
    %14 = arith.mulf %9, %13 : vector<8x16xf32>
    %15 = tpu.iota {dimensions = array<i32: 1>} : vector<8x16xi32>
    %16 = vector.broadcast %4 : vector<8x1xi32> to vector<8x16xi32>
    %17 = arith.cmpi eq, %15, %16 : vector<8x16xi32>
    %18 = arith.extui %17 : vector<8x16xi1> to vector<8x16xi32>
    %19 = arith.sitofp %18 : vector<8x16xi32> to vector<8x16xf32>
    %c-100_i32 = arith.constant -100 : i32
    %20 = vector.broadcast %c-100_i32 : i32 to vector<8x1xi32>
    %21 = arith.cmpi ne, %4, %20 : vector<8x1xi32>
    %22 = arith.extui %21 : vector<8x1xi1> to vector<8x1xi32>
    %23 = arith.sitofp %22 : vector<8x1xi32> to vector<8x1xf32>
    %24 = arith.mulf %14, %19 : vector<8x16xf32>
    %cst_5 = arith.constant dense<0.000000e+00> : vector<8xf32>
    %25 = vector.multi_reduction <add>, %24, %cst_5 [1] : vector<8x16xf32> to vector<8xf32>
    %26 = vector.shape_cast %25 : vector<8xf32> to vector<8x1xf32>
    %27 = arith.addf %14, %19 : vector<8x16xf32>
    %cst_6 = arith.constant dense<0.000000e+00> : vector<8xf32>
    %28 = vector.multi_reduction <add>, %27, %cst_6 [1] : vector<8x16xf32> to vector<8xf32>
    %29 = vector.shape_cast %28 : vector<8xf32> to vector<8x1xf32>
    %cst_7 = arith.constant 2.000000e+00 : f32
    %30 = vector.broadcast %cst_7 : f32 to vector<8x1xf32>
    %31 = arith.mulf %30, %26 : vector<8x1xf32>
    %cst_8 = arith.constant 0.000000e+00 : f32
    %32 = vector.broadcast %cst_8 : f32 to vector<8x1xf32>
    %33 = arith.addf %31, %32 : vector<8x1xf32>
    %cst_9 = arith.constant 9.99999997E-7 : f32
    %34 = vector.broadcast %cst_9 : f32 to vector<8x1xf32>
    %35 = arith.addf %29, %34 : vector<8x1xf32>
    %cst_10 = arith.constant 0.000000e+00 : f32
    %36 = vector.broadcast %cst_10 : f32 to vector<8x1xf32>
    %37 = arith.addf %35, %36 : vector<8x1xf32>
    %38 = arith.divf %33, %37 : vector<8x1xf32>
    %cst_11 = arith.constant 1.000000e+00 : f32
    %39 = vector.broadcast %cst_11 : f32 to vector<8x1xf32>
    %40 = arith.subf %39, %38 : vector<8x1xf32>
    %41 = arith.mulf %40, %23 : vector<8x1xf32>
    %c0_12 = arith.constant 0 : index
    %c0_13 = arith.constant 0 : index
    %c0_14 = arith.constant 0 : index
    %42 = vector.load %arg4[%c0_12, %c0_13, %c0_14] : memref<1x1x1xf32, #tpu.memory_space<vmem>>, vector<1x1x1xf32>
    %43 = vector.shape_cast %41 : vector<8x1xf32> to vector<1x8x1xf32>
    %cst_15 = arith.constant dense<0.000000e+00> : vector<1xf32>
    %44 = vector.multi_reduction <add>, %43, %cst_15 [1, 2] : vector<1x8x1xf32> to vector<1xf32>
    %45 = vector.shape_cast %44 : vector<1xf32> to vector<1x1x1xf32>
    %46 = vector.extract %45[0, 0, 0] : f32 from vector<1x1x1xf32>
    %47 = vector.broadcast %46 : f32 to vector<1x1x1xf32>
    %48 = arith.addf %42, %47 : vector<1x1x1xf32>
    %c0_16 = arith.constant 0 : index
    %c0_17 = arith.constant 0 : index
    %c0_18 = arith.constant 0 : index
    %49 = vector.load %arg4[%c0_16, %c0_17, %c0_18] : memref<1x1x1xf32, #tpu.memory_space<vmem>>, vector<1x1x1xf32>
    tpu.vector_store %arg4[%c0_16, %c0_17, %c0_18], %48 {strides = array<i32>} : memref<1x1x1xf32, #tpu.memory_space<vmem>>, vector<1x1x1xf32>,
    %c0_19 = arith.constant 0 : index
    %c0_20 = arith.constant 0 : index
    %c0_21 = arith.constant 0 : index
    %50 = vector.load %arg5[%c0_19, %c0_20, %c0_21] : memref<1x1x1xf32, #tpu.memory_space<vmem>>, vector<1x1x1xf32>
    %51 = vector.shape_cast %23 : vector<8x1xf32> to vector<1x8x1xf32>
    %cst_22 = arith.constant dense<0.000000e+00> : vector<1xf32>
    %52 = vector.multi_reduction <add>, %51, %cst_22 [1, 2] : vector<1x8x1xf32> to vector<1xf32>
    %53 = vector.shape_cast %52 : vector<1xf32> to vector<1x1x1xf32>
    %54 = vector.extract %53[0, 0, 0] : f32 from vector<1x1x1xf32>
    %55 = vector.broadcast %54 : f32 to vector<1x1x1xf32>
    %56 = arith.addf %50, %55 : vector<1x1x1xf32>
    %c0_23 = arith.constant 0 : index
    %c0_24 = arith.constant 0 : index
    %c0_25 = arith.constant 0 : index
    %57 = vector.load %arg5[%c0_23, %c0_24, %c0_25] : memref<1x1x1xf32, #tpu.memory_space<vmem>>, vector<1x1x1xf32>
    tpu.vector_store %arg5[%c0_23, %c0_24, %c0_25], %56 {strides = array<i32>} : memref<1x1x1xf32, #tpu.memory_space<vmem>>, vector<1x1x1xf32>,
    return
  }
  func.func @transform_0(%arg0: i32, %arg1: i32) -> (i32, i32) {
    %c1_i32 = arith.constant 1 : i32
    %0 = arith.muli %arg0, %c1_i32 : i32
    %1 = arith.addi %0, %arg1 : i32
    %c0_i32 = arith.constant 0 : i32
    %c0_i32_0 = arith.constant 0 : i32
    return %1, %c0_i32 : i32, i32
  }
  func.func @transform_1(%arg0: i32, %arg1: i32) -> (i32, i32) {
    %c1_i32 = arith.constant 1 : i32
    %0 = arith.muli %arg0, %c1_i32 : i32
    %1 = arith.addi %0, %arg1 : i32
    %c0_i32 = arith.constant 0 : i32
    %c0_i32_0 = arith.constant 0 : i32
    return %1, %c0_i32 : i32, i32
  }
  func.func @transform_2(%arg0: i32, %arg1: i32) -> (i32, i32, i32) {
    %c0_i32 = arith.constant 0 : i32
    %c0_i32_0 = arith.constant 0 : i32
    %c0_i32_1 = arith.constant 0 : i32
    return %arg0, %c0_i32, %c0_i32_0 : i32, i32, i32
  }
  func.func @transform_3(%arg0: i32, %arg1: i32) -> (i32, i32, i32) {
    %c0_i32 = arith.constant 0 : i32
    %c0_i32_0 = arith.constant 0 : i32
    %c0_i32_1 = arith.constant 0 : i32
    return %arg0, %c0_i32, %c0_i32_0 : i32, i32, i32
  }
}

</mosaic_0001>

<llo_original>
// kernel: tpu_custom_call.1
$region0: #{tpu_custom_call.1}
  #allocation0 [shape = 'u32[]', space=smem, size = 0x4, offset = 0x4, fixed_abs, tag = 'smem constant byte address 0x4 - core index']
  #allocation1 [shape = 'u32[144,128]{1,0:T(1,128)}', space=vmem, size = 0x12000, scoped, tag = 'internal scratch']
  %s0 = inlined_call_operand.vmem [shape: f32[16,16], index: 0, kind: input, shape index: {}]
  %s1 = inlined_call_operand.vmem [shape: s32[16,1], index: 1, kind: input, shape index: {}]
  %s2 = inlined_call_operand.vmem [shape: f32[2,1,1], index: 2, kind: output, shape index: {0}]
  %s3 = inlined_call_operand.vmem [shape: f32[2,1,1], index: 3, kind: output, shape index: {1}]
  %4 = xla_tuple %s2, %s3
  %s5 = sld [smem:[#allocation0]]
  $region53: #{tpu_custom_call.1} parent=0
    _
  %s7 = ssub.s32 1, %s5
  %s8 = scalar_select 0, %s7, %s5
  loop: start=0, step=1, limit=4
  $region2: #{tpu_custom_call.1} parent=0 // loop_pre_header
    _
  $region3: #{tpu_custom_call.1} parent=0 // loop_header
    %s10 = sphi 0, %s14
    %p11 = scmp.ge.s32.totalorder %s10, 4
    %s17 = sphi 0, %s29
    %s18 = sphi 0, %s25
    %s19 = sphi 0, %s17
    %s20 = sphi 0, %s18
    %s21 = sphi 0, %s19
    %s22 = sphi 0, %s20
    %s34 = sphi 0, %s36
    %s37 = sphi 0, %s34
    %s38 = sphi 0, %s37
    %s54 = sphi 0, %s38
    %s62 = sphi 0, %s64
    %s65 = sphi 0, %s62
    %s66 = sphi 0, %s65
    %s82 = sphi 0, %s66
    %s88 = sphi 0, %s90
    %s91 = sphi 0, %s88
    %s92 = sphi 0, %s91
    %s108 = sphi 0, %s92
    %s114 = sphi 0, %s116
    %s117 = sphi 0, %s114
    %s118 = sphi 0, %s117
    %s134 = sphi 0, %s118
  $region4: #{tpu_custom_call.1} parent=0 // loop_header_branch
    %13 = sbr.rel (%p11) target = $region8
  $region5: #{tpu_custom_call.1} parent=0 // loop_body
    %s15 = ssub.s32 %s10, 1
    %s16 = ssub.s32 %s10, 2
    %s23 = sadd.s32 1, %s18
    %p24 = scmp.ge.s32.totalorder %s23, 1
    %s25 = scalar_select %p24, 0, %s23
    %s26 = sadd.s32 1, %s17
    %s27 = scalar_select %p24, %s26, %s17
    %p28 = scmp.ge.s32.totalorder %s27, 2
    %s29 = scalar_select %p28, 0, %s27
    %s30 = sadd.s32 %s17, %s18
    %s31 = sadd.s32 %s29, %s25
    %s32 = ssub.s32 %s30, %s31
    %p33 = scmp.eq.s32.totalorder %s32, 0
    %s35 = sadd.s32 %s34, 1
    %s36 = scalar_select %p33, %s34, %s35
    %p39 = pneg %p33
    %p40 = scmp.eq.s32.totalorder %s10, 1
    %p41 = por %p39, %p40
    %p42 = scmp.ne.s32.totalorder %s34, %s37
    %p43 = scmp.eq.s32.totalorder %s10, 0
    %p44 = por %p42, %p43
    %p45 = scmp.ne.s32.totalorder %s34, %s37
    %p46 = scmp.eq.s32.totalorder %s15, 1
    %p47 = por %p45, %p46
    %p48 = scmp.ne.s32.totalorder %s37, %s38
    %p49 = scmp.eq.s32.totalorder %s15, 0
    %p50 = por %p48, %p49
    %p51 = scmp.ne.s32.totalorder %s37, %s38
    %p52 = scmp.eq.s32.totalorder %s16, 1
    %p53 = por %p51, %p52
    %p55 = scmp.ne.s32.totalorder %s38, %s54
    %p56 = scmp.eq.s32.totalorder %s16, 0
    %p57 = por %p55, %p56
    %s58 = sadd.s32 %s17, %s18
    %s59 = sadd.s32 %s29, %s25
    %s60 = ssub.s32 %s58, %s59
    %p61 = scmp.eq.s32.totalorder %s60, 0
    %s63 = sadd.s32 %s62, 1
    %s64 = scalar_select %p61, %s62, %s63
    %p67 = pneg %p61
    %p68 = scmp.eq.s32.totalorder %s10, 1
    %p69 = por %p67, %p68
    %p70 = scmp.ne.s32.totalorder %s62, %s65
    %p71 = scmp.eq.s32.totalorder %s10, 0
    %p72 = por %p70, %p71
    %p73 = scmp.ne.s32.totalorder %s62, %s65
    %p74 = scmp.eq.s32.totalorder %s15, 1
    %p75 = por %p73, %p74
    %p76 = scmp.ne.s32.totalorder %s65, %s66
    %p77 = scmp.eq.s32.totalorder %s15, 0
    %p78 = por %p76, %p77
    %p79 = scmp.ne.s32.totalorder %s65, %s66
    %p80 = scmp.eq.s32.totalorder %s16, 1
    %p81 = por %p79, %p80
    %p83 = scmp.ne.s32.totalorder %s66, %s82
    %p84 = scmp.eq.s32.totalorder %s16, 0
    %p85 = por %p83, %p84
    %s86 = ssub.s32 %s17, %s29
    %p87 = scmp.eq.s32.totalorder %s86, 0
    %s89 = sadd.s32 %s88, 1
    %s90 = scalar_select %p87, %s88, %s89
    %p93 = pneg %p87
    %p94 = scmp.eq.s32.totalorder %s10, 1
    %p95 = por %p93, %p94
    %p96 = scmp.ne.s32.totalorder %s88, %s91
    %p97 = scmp.eq.s32.totalorder %s10, 0
    %p98 = por %p96, %p97
    %p99 = scmp.ne.s32.totalorder %s88, %s91
    %p100 = scmp.eq.s32.totalorder %s15, 1
    %p101 = por %p99, %p100
    %p102 = scmp.ne.s32.totalorder %s91, %s92
    %p103 = scmp.eq.s32.totalorder %s15, 0
    %p104 = por %p102, %p103
    %p105 = scmp.ne.s32.totalorder %s91, %s92
    %p106 = scmp.eq.s32.totalorder %s16, 1
    %p107 = por %p105, %p106
    %p109 = scmp.ne.s32.totalorder %s92, %s108
    %p110 = scmp.eq.s32.totalorder %s16, 0
    %p111 = por %p109, %p110
    %s112 = ssub.s32 %s17, %s29
    %p113 = scmp.eq.s32.totalorder %s112, 0
    %s115 = sadd.s32 %s114, 1
    %s116 = scalar_select %p113, %s114, %s115
    %p119 = pneg %p113
    %p120 = scmp.eq.s32.totalorder %s10, 1
    %p121 = por %p119, %p120
    %p122 = scmp.ne.s32.totalorder %s114, %s117
    %p123 = scmp.eq.s32.totalorder %s10, 0
    %p124 = por %p122, %p123
    %p125 = scmp.ne.s32.totalorder %s114, %s117
    %p126 = scmp.eq.s32.totalorder %s15, 1
    %p127 = por %p125, %p126
    %p128 = scmp.ne.s32.totalorder %s117, %s118
    %p129 = scmp.eq.s32.totalorder %s15, 0
    %p130 = por %p128, %p129
    %p131 = scmp.ne.s32.totalorder %s117, %s118
    %p132 = scmp.eq.s32.totalorder %s16, 1
    %p133 = por %p131, %p132
    %p135 = scmp.ne.s32.totalorder %s118, %s134
    %p136 = scmp.eq.s32.totalorder %s16, 0
    %p137 = por %p135, %p136
    %p138 = scmp.le.s32.totalorder 1, %s10
    %p139 = scmp.lt.s32.totalorder %s10, 3
    %p140 = pnand %p138, %p139
    %p141 = pneg %p140
    // Predicated region
    $region9: #{tpu_custom_call.1} parent=5 // pred_check
      _
    $region10: #{tpu_custom_call.1} parent=5 // pred_check_branch
      %143 = sbr.rel (%p140) target = $region12
    $region11: #{tpu_custom_call.1} parent=5 // pred_region
      %s144 = ssub.s32 %s10, 1
    $region12: #{tpu_custom_call.1} parent=5 // pred_fallthru
      _
    %p145 = scmp.lt.s32.totalorder %s10, 2
    // Predicated region
    $region13: #{tpu_custom_call.1} parent=5 // pred_check
      %p146 = pneg %p145
    $region14: #{tpu_custom_call.1} parent=5 // pred_check_branch
      %148 = sbr.rel (%p146) target = $region16
    $region15: #{tpu_custom_call.1} parent=5 // pred_region
      // Predicated region
      $region17: #{tpu_custom_call.1} parent=15 // pred_check
        %p149 = pneg %p44
      $region18: #{tpu_custom_call.1} parent=15 // pred_check_branch
        %151 = sbr.rel (%p149) target = $region20
      $region19: #{tpu_custom_call.1} parent=15 // pred_region
        %s152 = sadd.s32 %s17, %s18
        %p153 = scmp.lt.s32.totalorder %s152, 1
        %s154 = scalar_select %p153, %s152, 1
        %s155 = smul.addr %s154, 8
        %s156 = scalar_lea.vmem %s0, %s155
        %s157 = sadd.s32 %s17, %s18
      $region20: #{tpu_custom_call.1} parent=15 // pred_fallthru
        _
      // Predicated region
      $region21: #{tpu_custom_call.1} parent=15 // pred_check
        %p158 = pneg %p72
      $region22: #{tpu_custom_call.1} parent=15 // pred_check_branch
        %160 = sbr.rel (%p158) target = $region24
      $region23: #{tpu_custom_call.1} parent=15 // pred_region
        %s161 = sadd.s32 %s17, %s18
        %p162 = scmp.lt.s32.totalorder %s161, 1
        %s163 = scalar_select %p162, %s161, 1
        %s164 = smul.addr %s163, 8
        %s165 = scalar_lea.vmem %s1, %s164
        %s166 = sadd.s32 %s17, %s18
      $region24: #{tpu_custom_call.1} parent=15 // pred_fallthru
        _
    $region16: #{tpu_custom_call.1} parent=5 // pred_fallthru
      _
    %p167 = scmp.le.s32.totalorder 1, %s10
    %p168 = scmp.lt.s32.totalorder %s10, 3
    %p169 = pnand %p167, %p168
    %p170 = pneg %p169
    // Predicated region
    $region25: #{tpu_custom_call.1} parent=5 // pred_check
      _
    $region26: #{tpu_custom_call.1} parent=5 // pred_check_branch
      %172 = sbr.rel (%p169) target = $region28
    $region27: #{tpu_custom_call.1} parent=5 // pred_region
      %s173 = ssub.s32 %s10, 1
      %s174 = sadd.s32 %s19, %s20
      %p175 = scmp.lt.s32.totalorder %s174, 1
      %s176 = scalar_select %p175, %s174, 1
      %s177 = smul.addr %s176, 8
      %s178 = scalar_lea.vmem %s0, %s177
      %p179 = pneg %p50
      %p180 = pneg %p47
      %s181 = sadd.s32 %s19, %s20
      %p182 = scmp.lt.s32.totalorder %s181, 1
      %s183 = scalar_select %p182, %s181, 1
      %s184 = smul.addr %s183, 8
      %s185 = scalar_lea.vmem %s1, %s184
      %p186 = pneg %p78
      %p187 = pneg %p75
      %p188 = pneg %p104
      %p189 = pneg %p101
      %p190 = scmp.lt.s32.totalorder %s19, 1
      %s191 = scalar_select %p190, %s19, 1
      %s192 = scalar_lea.vmem %s2, %s191
      %p193 = pneg %p130
      %p194 = pneg %p127
      %p195 = scmp.lt.s32.totalorder %s19, 1
      %s196 = scalar_select %p195, %s19, 1
      %s197 = scalar_lea.vmem %s3, %s196
      %s198 = sadd.s32 %s19, %s20
      %p199 = scmp.lt.s32.totalorder %s198, 1
      %s200 = scalar_select %p199, %s198, 1
      %s201 = smul.addr %s200, 8
      %s202 = scalar_lea.vmem %s0, %s201
      %s203 = sadd.s32 %s19, %s20
      %s204 = sadd.s32 %s19, %s20
      %p205 = scmp.lt.s32.totalorder %s204, 1
      %s206 = scalar_select %p205, %s204, 1
      %s207 = smul.addr %s206, 8
      %s208 = scalar_lea.vmem %s1, %s207
      %s209 = sadd.s32 %s19, %s20
      %p210 = scmp.lt.s32.totalorder %s19, 1
      %s211 = scalar_select %p210, %s19, 1
      %s212 = scalar_lea.vmem %s2, %s211
      %p213 = scmp.lt.s32.totalorder %s19, 1
      %s214 = scalar_select %p213, %s19, 1
      %s215 = scalar_lea.vmem %s3, %s214
      %p216 = scmp.eq.s32.totalorder %s20, 0
      // Predicated region
      $region29: #{tpu_custom_call.1} parent=27 // pred_check
        %p217 = pneg %p216
      $region30: #{tpu_custom_call.1} parent=27 // pred_check_branch
        %219 = sbr.rel (%p217) target = $region32
      $region31: #{tpu_custom_call.1} parent=27 // pred_region
        %vm220 = vcmask 0
        %221 = vst.msk [vmem:[%s212] sm:$0x1] %vm220, 0.0
        %222 = vst.msk [vmem:[%s215] sm:$0x1] %vm220, 0.0
      $region32: #{tpu_custom_call.1} parent=27 // pred_fallthru
        _
      %v223 = vld [vmem:[%s202] sm:$0xff]
      %v224 = vld [vmem:[%s208] sm:$0xff]
      %vm225 = vcmask 130048
      %v226 = vsel %vm225, %v223, -inf
      %227 = vmax.xlane.f32.xlu0 %v226
      %v228 = vpop.xlane.xlu0 %227
      %v229 = vsub.f32 %v223, %v228
      %v230 = vmul.f32 %v229, 1.442695
      %v231 = vpow.pop %v230
      %v232 = vsel %vm225, %v231, 0.0
      %233 = vadd.xlane.f32.xlu0 %v232
      %v234 = vpop.xlane.xlu0 %233
      %v235 = vrcp.pop %v234
      %v236 = vmul.f32 %v231, %v235
      %v237 = vlaneseq
      %v238 = vand.u32 %v237, 127
      %239 = vset.pattern.permute.xlu0 0
      %240 = vperm.xlu0 %239, %v224
      %v241 = vpop.permute.xlu0 %240
      %vm242 = vcmp.eq.s32.totalorder %v238, %v241
      %v243 = vsel %vm242, 1, 0
      %v244 = vcvt.s32.f32 %v243
      %vm245 = vcmp.ne.s32.totalorder %v224, 4294967196
      %v246 = vsel %vm245, 1, 0
      %v247 = vcvt.s32.f32 %v246
      %v248 = vmul.f32 %v236, %v244
      %v249 = vsel %vm225, %v248, 0.0
      %250 = vadd.xlane.f32.xlu0 %v249
      %v251 = vpop.xlane.xlu0 %250
      %v252 = vadd.f32 %v236, %v244
      %v253 = vsel %vm225, %v252, 0.0
      %254 = vadd.xlane.f32.xlu0 %v253
      %v255 = vpop.xlane.xlu0 %254
      %v256 = vmul.f32 %v251, 2.0
      %v257 = vadd.f32 %v256, 0.0
      %v258 = vadd.f32 %v255, 1e-06
      %v259 = vadd.f32 %v258, 0.0
      %v260 = vrcp.pop %v259
      %v261 = vmul.f32 %v257, %v260
      %v262 = vsub.f32 1.0, %v261
      %v263 = vmul.f32 %v262, %v247
      %v264 = vld [vmem:[%s212] sm:$0x1]
      %vm265 = vcmask 7168
      %v266 = vsel %vm265, %v263, 0.0
      %267 = vadd.xlane.f32.xlu0 %v266
      %v268 = vpop.xlane.xlu0 %267
      %v269 = vrot.slane %v268, 4
      %v270 = vadd.f32 %v268, %v269
      %v271 = vrot.slane %v270, 2
      %v272 = vadd.f32 %v270, %v271
      %v273 = vrot.slane %v272, 1
      %v274 = vadd.f32 %v272, %v273
      %s275 = vtos %v274
      %v276 = vstv %s275
      %v277 = vadd.f32 %v264, %v276
      %vm278 = vcmask 0
      %279 = vst.msk [vmem:[%s212] sm:$0x1] %vm278, %v277
      %v280 = vld [vmem:[%s215] sm:$0x1]
      %v281 = vsel %vm265, %v247, 0.0
      %282 = vadd.xlane.f32.xlu0 %v281
      %v283 = vpop.xlane.xlu0 %282
      %v284 = vrot.slane %v283, 4
      %v285 = vadd.f32 %v283, %v284
      %v286 = vrot.slane %v285, 2
      %v287 = vadd.f32 %v285, %v286
      %v288 = vrot.slane %v287, 1
      %v289 = vadd.f32 %v287, %v288
      %s290 = vtos %v289
      %v291 = vstv %s290
      %v292 = vadd.f32 %v280, %v291
      %293 = vst.msk [vmem:[%s215] sm:$0x1] %vm278, %v292
      %p294 = scmp.lt.s32.totalorder %s19, 1
      %s295 = scalar_select %p294, %s19, 1
      %s296 = scalar_lea.vmem %s2, %s295
      %p297 = scmp.lt.s32.totalorder %s19, 1
      %s298 = scalar_select %p297, %s19, 1
      %s299 = scalar_lea.vmem %s3, %s298
      // Predicated region
      $region33: #{tpu_custom_call.1} parent=27 // pred_check
        %p300 = pneg %p101
      $region34: #{tpu_custom_call.1} parent=27 // pred_check_branch
        %302 = sbr.rel (%p300) target = $region36
      $region35: #{tpu_custom_call.1} parent=27 // pred_region
        _
      $region36: #{tpu_custom_call.1} parent=27 // pred_fallthru
        _
      // Predicated region
      $region37: #{tpu_custom_call.1} parent=27 // pred_check
        %p303 = pneg %p127
      $region38: #{tpu_custom_call.1} parent=27 // pred_check_branch
        %305 = sbr.rel (%p303) target = $region40
      $region39: #{tpu_custom_call.1} parent=27 // pred_region
        _
      $region40: #{tpu_custom_call.1} parent=27 // pred_fallthru
        _
    $region28: #{tpu_custom_call.1} parent=5 // pred_fallthru
      _
    %p306 = scmp.le.s32.totalorder 2, %s10
    // Predicated region
    $region41: #{tpu_custom_call.1} parent=5 // pred_check
      %p307 = pneg %p306
    $region42: #{tpu_custom_call.1} parent=5 // pred_check_branch
      %309 = sbr.rel (%p307) target = $region44
    $region43: #{tpu_custom_call.1} parent=5 // pred_region
      %s310 = ssub.s32 %s10, 2
      // Predicated region
      $region45: #{tpu_custom_call.1} parent=43 // pred_check
        %p311 = pneg %p107
      $region46: #{tpu_custom_call.1} parent=43 // pred_check_branch
        %313 = sbr.rel (%p311) target = $region48
      $region47: #{tpu_custom_call.1} parent=43 // pred_region
        %p314 = scmp.lt.s32.totalorder %s21, 1
        %s315 = scalar_select %p314, %s21, 1
        %s316 = scalar_lea.vmem %s2, %s315
      $region48: #{tpu_custom_call.1} parent=43 // pred_fallthru
        _
      // Predicated region
      $region49: #{tpu_custom_call.1} parent=43 // pred_check
        %p317 = pneg %p133
      $region50: #{tpu_custom_call.1} parent=43 // pred_check_branch
        %319 = sbr.rel (%p317) target = $region52
      $region51: #{tpu_custom_call.1} parent=43 // pred_region
        %p320 = scmp.lt.s32.totalorder %s21, 1
        %s321 = scalar_select %p320, %s21, 1
        %s322 = scalar_lea.vmem %s3, %s321
      $region52: #{tpu_custom_call.1} parent=43 // pred_fallthru
        _
    $region44: #{tpu_custom_call.1} parent=5 // pred_fallthru
      _
  $region6: #{tpu_custom_call.1} parent=0 // loop_footer
    %s14 = sadd.s32 1, %s10
  $region7: #{tpu_custom_call.1} parent=0 // loop_footer_branch
    %9 = sbr.rel target = $region3
  $region8: #{tpu_custom_call.1} parent=0 // loop_exit
    _

</llo_original>
